<compile_context>
chip_gen: v6e
topology: v6e:2x2x1
jax: 0.10.0
libtpu: 0.0.40
codegen_flags: <defaults>
</compile_context>

<pallas_src>
import functools

import jax
import jax.numpy as jnp
from jax.experimental import pallas as pl
from jax.experimental.pallas import tpu as pltpu

_LANES = 128
_MAX_TILE_ROWS = 1024                     # 1024 rows * 128 lanes boxes per grid step
_VMEM_LIMIT_BYTES = 48 * 1024 * 1024      # > v5e 16 MiB default, < v7x 64 MiB physical


def _round_up(x, m):
    return ((x + m - 1) // m) * m


def _pick_tile_rows(rows):
    """Power-of-two tile height (sublane rows), >= 8, <= _MAX_TILE_ROWS."""
    if rows <= _MAX_TILE_ROWS:
        t = 8
        while t < rows:
            t *= 2
        return t
    # Large problems: largest tile keeping row-padding waste <= ~12.5%.
    for cand in (1024, 512, 256, 128, 64):
        if (_round_up(rows, cand) - rows) * 8 <= rows:
            return cand
    return 64


def _diou_kernel(pred_ref, target_ref, out_ref, *, eps, tile_rows, mode):
    """pred_ref / target_ref: (4, tile_rows, 128) f32 VMEM blocks (coord-major).

    mode == 'elem': out_ref is the (tile_rows, 128) elementwise loss tile.
    mode == 'psum': out_ref is an (8, 128) per-tile partial sum of (loss - 1);
                    zero-padded boxes contribute exactly 0, so no mask is needed.
    """
    b1_x1 = pred_ref[0]
    b1_y1 = pred_ref[1]
    b1_x2 = pred_ref[2]
    b1_y2 = pred_ref[3]
    b2_x1 = target_ref[0]
    b2_y1 = target_ref[1]
    b2_x2 = target_ref[2]
    b2_y2 = target_ref[3]

    # intersection
    wh_x = jnp.maximum(jnp.minimum(b1_x2, b2_x2) - jnp.maximum(b1_x1, b2_x1), 0.0)
    wh_y = jnp.maximum(jnp.minimum(b1_y2, b2_y2) - jnp.maximum(b1_y1, b2_y1), 0.0)
    overlap = wh_x * wh_y

    # union
    ap = (b1_x2 - b1_x1) * (b1_y2 - b1_y1)
    ag = (b2_x2 - b2_x1) * (b2_y2 - b2_y1)
    union = ap + ag - overlap + eps

    # smallest enclosing box diagonal^2
    cw = jnp.maximum(jnp.maximum(b1_x2, b2_x2) - jnp.minimum(b1_x1, b2_x1), 0.0)
    ch = jnp.maximum(jnp.maximum(b1_y2, b2_y2) - jnp.minimum(b1_y1, b2_y1), 0.0)
    c2 = cw * cw + ch * ch + eps

    # center distance^2
    dx = b2_x1 + b2_x2 - (b1_x1 + b1_x2)
    dy = b2_y1 + b2_y2 - (b1_y1 + b1_y2)
    rho2 = (dx * dx + dy * dy) * 0.25

    # loss = 1 - (overlap/union - rho2/c2) folded into ONE reciprocal:
    #   loss - 1 = (rho2*union - overlap*c2) / (union*c2)
    # EUP approx reciprocal + one Newton step -> full f32 accuracy, off the VALU.
    # NOTE: assumes pixel-scale (non-huge) coordinates so union*c2 stays in f32 range.
    denom = union * c2
    inv = pl.reciprocal(denom, approx=True)
    inv = inv * (2.0 - denom * inv)          # Newton-Raphson refinement
    num = overlap * c2 - rho2 * union

    if mode == "elem":
        out_ref[...] = 1.0 - num * inv
    else:
        d = -(num * inv)                     # == loss - 1; zero-pad rows give exactly 0
        # Pairwise tree reduce (tile_rows,128) -> (8,128): sublane-aligned vreg adds,
        # log-depth instead of a serial accumulator chain.
        r = tile_rows
        while r > 8:
            half = r // 2
            d = d[:half] + d[half:]
            r = half
        out_ref[...] = d


def _pack(pred, target):
    """(n,4) x2 -> two coord-major (4, rows_pad, 128) f32 slabs."""
    n = pred.shape[0]
    rows = max(1, -(-n // _LANES))
    tile_rows = _pick_tile_rows(rows)
    rows_pad = _round_up(rows, tile_rows)
    n_pad = rows_pad * _LANES

    def pack_one(x):
        # TODO(synk): if the producer can emit coord-major (4, n) directly, this
        # transpose disappears and packing becomes a pure pad+reshape.
        x = jnp.asarray(x, jnp.float32).T                # (4, n)
        x = jnp.pad(x, ((0, 0), (0, n_pad - n)))         # zero pads -> loss == 1 exactly
        return x.reshape(4, rows_pad, _LANES)

    return pack_one(pred), pack_one(target), n, tile_rows, rows_pad


def _common_specs(tile_rows):
    in_specs = [pl.BlockSpec((4, tile_rows, _LANES), lambda i: (0, i, 0)),
                pl.BlockSpec((4, tile_rows, _LANES), lambda i: (0, i, 0))]
    cparams = pltpu.CompilerParams(
        dimension_semantics=("parallel",),
        vmem_limit_bytes=_VMEM_LIMIT_BYTES)
    return in_specs, cparams


@functools.partial(jax.jit, static_argnames=("eps",))
def diou_loss_elementwise_pallas(pred, target, *, eps=1e-6):
    """Per-box DIoU loss, shape (n,)."""
    pred_s, tgt_s, n, tile_rows, rows_pad = _pack(pred, target)
    grid = rows_pad // tile_rows
    in_specs, cparams = _common_specs(tile_rows)
    kernel = functools.partial(_diou_kernel, eps=eps, tile_rows=tile_rows, mode="elem")
    out = pl.pallas_call(
        kernel,
        out_shape=jax.ShapeDtypeStruct((rows_pad, _LANES), jnp.float32),
        grid=(grid,),
        in_specs=in_specs,
        out_specs=pl.BlockSpec((tile_rows, _LANES), lambda i: (i, 0)),
        compiler_params=cparams,
    )(pred_s, tgt_s)
    return out.reshape(-1)[:n]


@functools.partial(jax.jit, static_argnames=("eps",))
def diou_loss_sum_pallas(pred, target, *, eps=1e-6):
    """Sum of DIoU loss over all n boxes (reduction path: no elementwise write)."""
    pred_s, tgt_s, n, tile_rows, rows_pad = _pack(pred, target)
    grid = rows_pad // tile_rows
    in_specs, cparams = _common_specs(tile_rows)
    kernel = functools.partial(_diou_kernel, eps=eps, tile_rows=tile_rows, mode="psum")
    psums = pl.pallas_call(
        kernel,
        out_shape=jax.ShapeDtypeStruct((grid * 8, _LANES), jnp.float32),
        grid=(grid,),
        in_specs=in_specs,
        out_specs=pl.BlockSpec((8, _LANES), lambda i: (i, 0)),
        compiler_params=cparams,
    )(pred_s, tgt_s)
    # Kernel sums (loss - 1); padded boxes contribute exactly 0, so
    # sum(loss over valid boxes) = sum(psums) + n.
    return jnp.sum(psums) + jnp.float32(n)


class MyDIoULossPallas:
    """Mirrors MyDIoULoss(eps, reduction, loss_weight).forward for weight=None."""

    def __init__(self, eps=1e-6, reduction="mean", loss_weight=1.0):
        self.eps = eps
        self.reduction = reduction
        self.loss_weight = loss_weight

    def __call__(self, pred, target, weight=None, avg_factor=None,
                 reduction_override=None):
        # TODO(synk): per-element `weight` / `avg_factor` rescaling paths of
        # @weighted_loss are not replicated in-kernel; only weight=None is covered.
        assert weight is None and avg_factor is None
        assert reduction_override in (None, "none", "mean", "sum")
        reduction = reduction_override if reduction_override else self.reduction

        if reduction == "none":
            return self.loss_weight * diou_loss_elementwise_pallas(
                pred, target, eps=self.eps)

        total = diou_loss_sum_pallas(pred, target, eps=self.eps)
        if reduction == "sum":
            return self.loss_weight * total
        # mean (note: n == 0 would divide by zero, same as torch.mean of empty)
        n = pred.shape[0]
        return self.loss_weight * total / n


def _diou_ref(pred, target, eps=1e-6):
    """Pure-JAX reference mirroring the PyTorch diou_loss (per-element)."""
    lt = jnp.maximum(pred[:, :2], target[:, :2])
    rb = jnp.minimum(pred[:, 2:], target[:, 2:])
    wh = jnp.maximum(rb - lt, 0.0)
    overlap = wh[:, 0] * wh[:, 1]
    ap = (pred[:, 2] - pred[:, 0]) * (pred[:, 3] - pred[:, 1])
    ag = (target[:, 2] - target[:, 0]) * (target[:, 3] - target[:, 1])
    union = ap + ag - overlap + eps
    ious = overlap / union
    e_lt = jnp.minimum(pred[:, :2], target[:, :2])
    e_rb = jnp.maximum(pred[:, 2:], target[:, 2:])
    e_wh = jnp.maximum(e_rb - e_lt, 0.0)
    c2 = e_wh[:, 0] ** 2 + e_wh[:, 1] ** 2 + eps
    left = (target[:, 0] + target[:, 2] - (pred[:, 0] + pred[:, 2])) ** 2 / 4
    right = (target[:, 1] + target[:, 3] - (pred[:, 1] + pred[:, 3])) ** 2 / 4
    rho2 = left + right
    return 1.0 - (ious - rho2 / c2)


if __name__ == "__main__":
    key = jax.random.PRNGKey(0)

    def make_boxes(k, n):
        k1, k2 = jax.random.split(k)
        xy = jax.random.uniform(k1, (n, 2), jnp.float32, 0.0, 8.0)
        wh = jax.random.uniform(k2, (n, 2), jnp.float32, 0.5, 4.0)
        return jnp.concatenate([xy, xy + wh], axis=1)          # (n, 4), valid boxes

    ok = True
    for n in (5, 8, 300):   # exercises lane/sublane padding and >1 sublane row
        kp, kt, key = jax.random.split(key, 3)
        pred = make_boxes(kp, n)
        target = make_boxes(kt, n)

        ref_elem = _diou_ref(pred, target, eps=1e-6)

        loss_mean = MyDIoULossPallas(reduction="mean")(pred, target)
        loss_sum = MyDIoULossPallas(reduction="sum")(pred, target)
        loss_none = MyDIoULossPallas(reduction="none")(pred, target)
        jax.block_until_ready((loss_mean, loss_sum, loss_none))

        ok &= bool(jnp.allclose(loss_mean, jnp.mean(ref_elem), rtol=1e-4, atol=1e-4))
        ok &= bool(jnp.allclose(loss_sum, jnp.sum(ref_elem), rtol=1e-4, atol=1e-3))
        ok &= bool(jnp.allclose(loss_none, ref_elem, rtol=1e-4, atol=1e-4))

    assert ok, "Pallas DIoU loss does not match the JAX reference"
    print("KERNEL_OK")
</pallas_src>

<mosaic_0001>
module attributes {stable_mosaic.version = 11 : i64} {
  func.func @_diou_kernel(%arg0: i32, %arg1: memref<4x8x128xf32, #tpu.memory_space<vmem>>, %arg2: memref<4x8x128xf32, #tpu.memory_space<vmem>>, %arg3: memref<8x128xf32, #tpu.memory_space<vmem>>) attributes {dimension_semantics = [#tpu.dimension_semantics<parallel>], iteration_bounds = array<i64: 1>, scalar_prefetch = 0 : i64, scratch_operands = 0 : i64, tpu.core_type = #tpu.core_type<tc>, window_params = [{transform_indices = @transform_0, window_bounds = array<i64: 4, 8, 128>}, {transform_indices = @transform_1, window_bounds = array<i64: 4, 8, 128>}, {transform_indices = @transform_2, window_bounds = array<i64: 8, 128>}]} {
    %c0 = arith.constant 0 : index
    %c0_0 = arith.constant 0 : index
    %c0_1 = arith.constant 0 : index
    %0 = vector.load %arg1[%c0, %c0_0, %c0_1] : memref<4x8x128xf32, #tpu.memory_space<vmem>>, vector<1x8x128xf32>
    %1 = vector.shape_cast %0 : vector<1x8x128xf32> to vector<8x128xf32>
    %c1 = arith.constant 1 : index
    %c0_2 = arith.constant 0 : index
    %c0_3 = arith.constant 0 : index
    %2 = vector.load %arg1[%c1, %c0_2, %c0_3] : memref<4x8x128xf32, #tpu.memory_space<vmem>>, vector<1x8x128xf32>
    %3 = vector.shape_cast %2 : vector<1x8x128xf32> to vector<8x128xf32>
    %c2 = arith.constant 2 : index
    %c0_4 = arith.constant 0 : index
    %c0_5 = arith.constant 0 : index
    %4 = vector.load %arg1[%c2, %c0_4, %c0_5] : memref<4x8x128xf32, #tpu.memory_space<vmem>>, vector<1x8x128xf32>
    %5 = vector.shape_cast %4 : vector<1x8x128xf32> to vector<8x128xf32>
    %c3 = arith.constant 3 : index
    %c0_6 = arith.constant 0 : index
    %c0_7 = arith.constant 0 : index
    %6 = vector.load %arg1[%c3, %c0_6, %c0_7] : memref<4x8x128xf32, #tpu.memory_space<vmem>>, vector<1x8x128xf32>
    %7 = vector.shape_cast %6 : vector<1x8x128xf32> to vector<8x128xf32>
    %c0_8 = arith.constant 0 : index
    %c0_9 = arith.constant 0 : index
    %c0_10 = arith.constant 0 : index
    %8 = vector.load %arg2[%c0_8, %c0_9, %c0_10] : memref<4x8x128xf32, #tpu.memory_space<vmem>>, vector<1x8x128xf32>
    %9 = vector.shape_cast %8 : vector<1x8x128xf32> to vector<8x128xf32>
    %c1_11 = arith.constant 1 : index
    %c0_12 = arith.constant 0 : index
    %c0_13 = arith.constant 0 : index
    %10 = vector.load %arg2[%c1_11, %c0_12, %c0_13] : memref<4x8x128xf32, #tpu.memory_space<vmem>>, vector<1x8x128xf32>
    %11 = vector.shape_cast %10 : vector<1x8x128xf32> to vector<8x128xf32>
    %c2_14 = arith.constant 2 : index
    %c0_15 = arith.constant 0 : index
    %c0_16 = arith.constant 0 : index
    %12 = vector.load %arg2[%c2_14, %c0_15, %c0_16] : memref<4x8x128xf32, #tpu.memory_space<vmem>>, vector<1x8x128xf32>
    %13 = vector.shape_cast %12 : vector<1x8x128xf32> to vector<8x128xf32>
    %c3_17 = arith.constant 3 : index
    %c0_18 = arith.constant 0 : index
    %c0_19 = arith.constant 0 : index
    %14 = vector.load %arg2[%c3_17, %c0_18, %c0_19] : memref<4x8x128xf32, #tpu.memory_space<vmem>>, vector<1x8x128xf32>
    %15 = vector.shape_cast %14 : vector<1x8x128xf32> to vector<8x128xf32>
    %16 = arith.minimumf %5, %13 : vector<8x128xf32>
    %17 = arith.maximumf %1, %9 : vector<8x128xf32>
    %18 = arith.subf %16, %17 : vector<8x128xf32>
    %cst = arith.constant 0.000000e+00 : f32
    %19 = vector.broadcast %cst : f32 to vector<8x128xf32>
    %20 = arith.maximumf %18, %19 : vector<8x128xf32>
    %21 = arith.minimumf %7, %15 : vector<8x128xf32>
    %22 = arith.maximumf %3, %11 : vector<8x128xf32>
    %23 = arith.subf %21, %22 : vector<8x128xf32>
    %cst_20 = arith.constant 0.000000e+00 : f32
    %24 = vector.broadcast %cst_20 : f32 to vector<8x128xf32>
    %25 = arith.maximumf %23, %24 : vector<8x128xf32>
    %26 = arith.mulf %20, %25 : vector<8x128xf32>
    %27 = arith.subf %5, %1 : vector<8x128xf32>
    %28 = arith.subf %7, %3 : vector<8x128xf32>
    %29 = arith.mulf %27, %28 : vector<8x128xf32>
    %30 = arith.subf %13, %9 : vector<8x128xf32>
    %31 = arith.subf %15, %11 : vector<8x128xf32>
    %32 = arith.mulf %30, %31 : vector<8x128xf32>
    %33 = arith.addf %29, %32 : vector<8x128xf32>
    %34 = arith.subf %33, %26 : vector<8x128xf32>
    %cst_21 = arith.constant 9.99999997E-7 : f32
    %35 = vector.broadcast %cst_21 : f32 to vector<8x128xf32>
    %36 = arith.addf %34, %35 : vector<8x128xf32>
    %37 = arith.maximumf %5, %13 : vector<8x128xf32>
    %38 = arith.minimumf %1, %9 : vector<8x128xf32>
    %39 = arith.subf %37, %38 : vector<8x128xf32>
    %cst_22 = arith.constant 0.000000e+00 : f32
    %40 = vector.broadcast %cst_22 : f32 to vector<8x128xf32>
    %41 = arith.maximumf %39, %40 : vector<8x128xf32>
    %42 = arith.maximumf %7, %15 : vector<8x128xf32>
    %43 = arith.minimumf %3, %11 : vector<8x128xf32>
    %44 = arith.subf %42, %43 : vector<8x128xf32>
    %cst_23 = arith.constant 0.000000e+00 : f32
    %45 = vector.broadcast %cst_23 : f32 to vector<8x128xf32>
    %46 = arith.maximumf %44, %45 : vector<8x128xf32>
    %47 = arith.mulf %41, %41 : vector<8x128xf32>
    %48 = arith.mulf %46, %46 : vector<8x128xf32>
    %49 = arith.addf %47, %48 : vector<8x128xf32>
    %cst_24 = arith.constant 9.99999997E-7 : f32
    %50 = vector.broadcast %cst_24 : f32 to vector<8x128xf32>
    %51 = arith.addf %49, %50 : vector<8x128xf32>
    %52 = arith.addf %9, %13 : vector<8x128xf32>
    %53 = arith.addf %1, %5 : vector<8x128xf32>
    %54 = arith.subf %52, %53 : vector<8x128xf32>
    %55 = arith.addf %11, %15 : vector<8x128xf32>
    %56 = arith.addf %3, %7 : vector<8x128xf32>
    %57 = arith.subf %55, %56 : vector<8x128xf32>
    %58 = arith.mulf %54, %54 : vector<8x128xf32>
    %59 = arith.mulf %57, %57 : vector<8x128xf32>
    %60 = arith.addf %58, %59 : vector<8x128xf32>
    %cst_25 = arith.constant 2.500000e-01 : f32
    %61 = vector.broadcast %cst_25 : f32 to vector<8x128xf32>
    %62 = arith.mulf %60, %61 : vector<8x128xf32>
    %63 = arith.mulf %36, %51 : vector<8x128xf32>
    %64 = tpu.reciprocal %63 {approx = true} : vector<8x128xf32> -> vector<8x128xf32>
    %65 = arith.mulf %63, %64 : vector<8x128xf32>
    %cst_26 = arith.constant 2.000000e+00 : f32
    %66 = vector.broadcast %cst_26 : f32 to vector<8x128xf32>
    %67 = arith.subf %66, %65 : vector<8x128xf32>
    %68 = arith.mulf %64, %67 : vector<8x128xf32>
    %69 = arith.mulf %26, %51 : vector<8x128xf32>
    %70 = arith.mulf %62, %36 : vector<8x128xf32>
    %71 = arith.subf %69, %70 : vector<8x128xf32>
    %72 = arith.mulf %71, %68 : vector<8x128xf32>
    %cst_27 = arith.constant 0.000000e+00 : f32
    %73 = vector.broadcast %cst_27 : f32 to vector<8x128xf32>
    %74 = arith.subf %73, %72 : vector<8x128xf32>
    %c0_28 = arith.constant 0 : index
    %c0_29 = arith.constant 0 : index
    %75 = vector.load %arg3[%c0_28, %c0_29] : memref<8x128xf32, #tpu.memory_space<vmem>>, vector<8x128xf32>
    tpu.vector_store %arg3[%c0_28, %c0_29], %74 {strides = array<i32>} : memref<8x128xf32, #tpu.memory_space<vmem>>, vector<8x128xf32>,
    return
  }
  func.func @transform_0(%arg0: i32) -> (i32, i32, i32) {
    %c0_i32 = arith.constant 0 : i32
    %c0_i32_0 = arith.constant 0 : i32
    %c0_i32_1 = arith.constant 0 : i32
    return %c0_i32, %arg0, %c0_i32_0 : i32, i32, i32
  }
  func.func @transform_1(%arg0: i32) -> (i32, i32, i32) {
    %c0_i32 = arith.constant 0 : i32
    %c0_i32_0 = arith.constant 0 : i32
    %c0_i32_1 = arith.constant 0 : i32
    return %c0_i32, %arg0, %c0_i32_0 : i32, i32, i32
  }
  func.func @transform_2(%arg0: i32) -> (i32, i32) {
    %c0_i32 = arith.constant 0 : i32
    %c0_i32_0 = arith.constant 0 : i32
    return %arg0, %c0_i32 : i32, i32
  }
}

</mosaic_0001>

<llo_original>
// kernel: diou_loss_sum_pallas.1
$region0: #{diou_loss_sum_pallas.1}
  #allocation0 [shape = 'u32[]', space=smem, size = 0x4, offset = 0x4, fixed_abs, tag = 'smem constant byte address 0x4 - core index']
  #allocation1 [shape = 'u32[144,128]{1,0:T(1,128)}', space=vmem, size = 0x12000, scoped, tag = 'internal scratch']
  %s0 = inlined_call_operand.vmem [shape: f32[4,8,128], index: 0, kind: input, shape index: {}]
  %s1 = inlined_call_operand.vmem [shape: f32[4,8,128], index: 1, kind: input, shape index: {}]
  %s2 = inlined_call_operand.vmem [shape: f32[8,128], index: 2, kind: output, shape index: {}]
  %s3 = sld [smem:[#allocation0]]
  $region18: #{diou_loss_sum_pallas.1} parent=0
    _
  %s5 = ssub.s32 1, %s3
  %s6 = scalar_select 0, %s5, %s3
  // Predicated region
  $region2: #{diou_loss_sum_pallas.1} parent=0 // pred_check
    _
  $region3: #{diou_loss_sum_pallas.1} parent=0 // pred_check_branch
    %8 = sbr.rel (0) target = $region5
  $region4: #{diou_loss_sum_pallas.1} parent=0 // pred_region
    _
  $region5: #{diou_loss_sum_pallas.1} parent=0 // pred_fallthru
    _
  // Predicated region
  $region6: #{diou_loss_sum_pallas.1} parent=0 // pred_check
    _
  $region7: #{diou_loss_sum_pallas.1} parent=0 // pred_check_branch
    %10 = sbr.rel (0) target = $region9
  $region8: #{diou_loss_sum_pallas.1} parent=0 // pred_region
    _
  $region9: #{diou_loss_sum_pallas.1} parent=0 // pred_fallthru
    _
  %v11 = vld [vmem:[%s0] sm:$0xff]
  %s12 = scalar_lea.vmem %s0, 8
  %v13 = vld [vmem:[%s12] sm:$0xff]
  %s14 = scalar_lea.vmem %s0, 16
  %v15 = vld [vmem:[%s14] sm:$0xff]
  %s16 = scalar_lea.vmem %s0, 24
  %v17 = vld [vmem:[%s16] sm:$0xff]
  %v18 = vld [vmem:[%s1] sm:$0xff]
  %s19 = scalar_lea.vmem %s1, 8
  %v20 = vld [vmem:[%s19] sm:$0xff]
  %s21 = scalar_lea.vmem %s1, 16
  %v22 = vld [vmem:[%s21] sm:$0xff]
  %s23 = scalar_lea.vmem %s1, 24
  %v24 = vld [vmem:[%s23] sm:$0xff]
  %v25 = vmin.f32 %v15, %v22
  %v26 = vmax.f32 %v11, %v18
  %v27 = vsub.f32 %v25, %v26
  %v28 = vmax.f32 %v27, 0.0
  %v29 = vmin.f32 %v17, %v24
  %v30 = vmax.f32 %v13, %v20
  %v31 = vsub.f32 %v29, %v30
  %v32 = vmax.f32 %v31, 0.0
  %v33 = vmul.f32 %v28, %v32
  %v34 = vsub.f32 %v15, %v11
  %v35 = vsub.f32 %v17, %v13
  %v36 = vmul.f32 %v34, %v35
  %v37 = vsub.f32 %v22, %v18
  %v38 = vsub.f32 %v24, %v20
  %v39 = vmul.f32 %v37, %v38
  %v40 = vadd.f32 %v36, %v39
  %v41 = vsub.f32 %v40, %v33
  %v42 = vadd.f32 %v41, 1e-06
  %v43 = vmax.f32 %v15, %v22
  %v44 = vmin.f32 %v11, %v18
  %v45 = vsub.f32 %v43, %v44
  %v46 = vmax.f32 %v45, 0.0
  %v47 = vmax.f32 %v17, %v24
  %v48 = vmin.f32 %v13, %v20
  %v49 = vsub.f32 %v47, %v48
  %v50 = vmax.f32 %v49, 0.0
  %v51 = vmul.f32 %v46, %v46
  %v52 = vmul.f32 %v50, %v50
  %v53 = vadd.f32 %v51, %v52
  %v54 = vadd.f32 %v53, 1e-06
  %v55 = vadd.f32 %v18, %v22
  %v56 = vadd.f32 %v11, %v15
  %v57 = vsub.f32 %v55, %v56
  %v58 = vadd.f32 %v20, %v24
  %v59 = vadd.f32 %v13, %v17
  %v60 = vsub.f32 %v58, %v59
  %v61 = vmul.f32 %v57, %v57
  %v62 = vmul.f32 %v60, %v60
  %v63 = vadd.f32 %v61, %v62
  %v64 = vmul.f32 %v63, 0.25
  %v65 = vmul.f32 %v42, %v54
  %v66 = vrcp.pop %v65
  %v67 = vmul.f32 %v65, %v66
  %v68 = vsub.f32 2.0, %v67
  %v69 = vmul.f32 %v66, %v68
  %v70 = vmul.f32 %v33, %v54
  %v71 = vmul.f32 %v64, %v42
  %v72 = vsub.f32 %v70, %v71
  %v73 = vmul.f32 %v72, %v69
  %v74 = vsub.f32 0.0, %v73
  %75 = vst [vmem:[%s2] sm:$0xff] %v74
  // Predicated region
  $region10: #{diou_loss_sum_pallas.1} parent=0 // pred_check
    _
  $region11: #{diou_loss_sum_pallas.1} parent=0 // pred_check_branch
    %77 = sbr.rel (0) target = $region13
  $region12: #{diou_loss_sum_pallas.1} parent=0 // pred_region
    _
  $region13: #{diou_loss_sum_pallas.1} parent=0 // pred_fallthru
    _
  // Predicated region
  $region14: #{diou_loss_sum_pallas.1} parent=0 // pred_check
    _
  $region15: #{diou_loss_sum_pallas.1} parent=0 // pred_check_branch
    %79 = sbr.rel (0) target = $region17
  $region16: #{diou_loss_sum_pallas.1} parent=0 // pred_region
    _
  $region17: #{diou_loss_sum_pallas.1} parent=0 // pred_fallthru
    _

</llo_original>
